<compile_context>
chip_gen: v7x
topology: tpu7x:2x2x1
jax: 0.10.0
libtpu: 0.0.40
codegen_flags: <defaults>
</compile_context>

<pallas_src>
import math

import jax
import jax.numpy as jnp
from jax.experimental import pallas as pl
from jax.experimental.pallas import tpu as pltpu


def _round_up(v, m):
    return ((v + m - 1) // m) * m


def _fit(tile, dim, align):
    """Clamp a tile size to the problem.

    Returns the full dim (always a legal block size) when it fits in `tile`,
    otherwise an `align`-aligned tile strictly smaller than dim.
    """
    if dim <= tile:
        return dim
    tile = _round_up(tile, align)
    return dim if tile >= dim else tile


def _make_matmul_kernel(tk, k_rem, use_acc_scratch):
    """Kernel body for grid (B, M/tm, N/tn, K/tk); K is grid axis 3."""

    def kernel(a_ref, b_ref, o_ref, *scratch):
        k = pl.program_id(3)
        nk = pl.num_programs(3)

        a = a_ref[...]
        b = b_ref[...]

        if k_rem:
            # Last K block is partial: the out-of-bounds tail of the VMEM block
            # holds unspecified data, and garbage along K would corrupt valid
            # outputs -> zero-mask the tail of BOTH operands.
            limit = jnp.where(k == nk - 1, k_rem, tk)
            a_iota = jax.lax.broadcasted_iota(jnp.int32, a.shape, 1)
            b_iota = jax.lax.broadcasted_iota(jnp.int32, b.shape, 0)
            a = jnp.where(a_iota < limit, a, jnp.zeros_like(a))
            b = jnp.where(b_iota < limit, b, jnp.zeros_like(b))

        acc_ref = scratch[0] if use_acc_scratch else o_ref

        @pl.when(k == 0)
        def _():
            acc_ref[...] = jnp.zeros_like(acc_ref)

        acc_ref[...] += jnp.dot(a, b, preferred_element_type=jnp.float32)

        if use_acc_scratch:
            @pl.when(k == nk - 1)
            def _():
                o_ref[...] = acc_ref[...].astype(o_ref.dtype)

    return kernel


def matmul(x, y, *, tm=512, tn=512, tk=512):
    """Pallas TPU equivalent of torch.matmul for >=2-D operands."""
    x = jnp.asarray(x)
    y = jnp.asarray(y)
    assert x.ndim >= 2 and y.ndim >= 2, "only >=2-D operands supported"
    # TODO(synk): torch.matmul's 1-D operand promotion (vector @ matrix) is not
    # implemented; only >=2-D operands are supported.

    out_dtype = jnp.promote_types(x.dtype, y.dtype)
    # Keep operands at their native (narrow) width -- narrow MXU inputs and
    # halved HBM traffic.  Only unify when the operand dtypes actually differ;
    # accumulation is always f32 regardless.
    if x.dtype != y.dtype:
        x = x.astype(out_dtype)
        y = y.astype(out_dtype)

    M, K = x.shape[-2:]
    K2, N = y.shape[-2:]
    assert K == K2, (x.shape, y.shape)

    # --- batch handling: never materialize a broadcast of a shared operand ---
    bshape = jnp.broadcast_shapes(x.shape[:-2], y.shape[:-2])
    B = int(math.prod(bshape)) if bshape else 1

    def prep(op, rows, cols):
        bdims = op.shape[:-2]
        if bdims == bshape:
            return op.reshape((B, rows, cols)), False
        if math.prod(bdims) == 1:
            # Shared operand: keep one physical copy; index_map points every
            # batch grid step at block 0.
            return op.reshape((1, rows, cols)), True
        # Partial broadcast (rare): materialize.
        return (jnp.broadcast_to(op, bshape + (rows, cols)).reshape((B, rows, cols)),
                False)

    xb, x_shared = prep(x, M, K)
    yb, y_shared = prep(y, K, N)

    # --- tile selection -------------------------------------------------------
    # Sublane tile dims: multiples of 8 (f32) / 16 (bf16) / 32 (8-bit).
    # Lane tile dims: multiples of 128.  A full dim is always legal.
    def sublane(dt):
        return max(8, 32 // jnp.dtype(dt).itemsize)

    sub_m = max(sublane(xb.dtype), sublane(out_dtype))  # tm: sublane of A and O
    tm = _fit(tm, M, sub_m)
    tn = _fit(tn, N, 128)                               # tn: lane of B and O
    tk = _fit(tk, K, 128)                               # tk: lane of A, sublane of B

    # Ensure >=2 "parallel" blocks so v7x's two TensorCores both get work
    # (harmless on single-core v5e/v6e).
    if B * pl.cdiv(M, tm) * pl.cdiv(N, tn) == 1:
        if N > 128:
            tn = _fit(pl.cdiv(N, 2), N, 128)
        elif M > 2 * sub_m:
            tm = _fit(pl.cdiv(M, 2), M, sub_m)

    grid = (B, pl.cdiv(M, tm), pl.cdiv(N, tn), pl.cdiv(K, tk))
    k_rem = K % tk  # 0 => no in-kernel K-tail masking needed

    # f32 outputs accumulate directly into the K-resident output block; other
    # output dtypes get a dedicated f32 VMEM accumulator + epilogue cast.
    use_acc_scratch = jnp.dtype(out_dtype) != jnp.dtype(jnp.float32)
    scratch_shapes = [pltpu.VMEM((tm, tn), jnp.float32)] if use_acc_scratch else []

    x_map = (lambda b, i, j, k: (0, i, k)) if x_shared else (lambda b, i, j, k: (b, i, k))
    y_map = (lambda b, i, j, k: (0, k, j)) if y_shared else (lambda b, i, j, k: (b, k, j))

    x_item = jnp.dtype(xb.dtype).itemsize
    y_item = jnp.dtype(yb.dtype).itemsize
    o_item = jnp.dtype(out_dtype).itemsize

    # A is re-read once per N-block, B once per M-block.
    cost = pl.CostEstimate(
        flops=2 * B * M * N * K,
        transcendentals=0,
        bytes_accessed=int(
            B * (grid[2] * M * K * x_item + grid[1] * K * N * y_item + M * N * o_item)
        ),
    )

    # VMEM budget: double-buffered input/output blocks + optional accumulator.
    vmem_needed = (
        2 * (tm * tk * x_item + tk * tn * y_item)
        + 2 * tm * tn * o_item
        + (tm * tn * 4 if use_acc_scratch else 0)
    )
    vmem_limit = min(64 * 1024 * 1024,
                     max(int(1.5 * vmem_needed) + (2 << 20), 32 * 1024 * 1024))

    out = pl.pallas_call(
        _make_matmul_kernel(tk, k_rem, use_acc_scratch),
        out_shape=jax.ShapeDtypeStruct((B, M, N), out_dtype),
        grid_spec=pltpu.PrefetchScalarGridSpec(
            num_scalar_prefetch=0,
            grid=grid,
            in_specs=[
                pl.BlockSpec((pl.Squeezed(), tm, tk), x_map),
                pl.BlockSpec((pl.Squeezed(), tk, tn), y_map),
            ],
            out_specs=pl.BlockSpec((pl.Squeezed(), tm, tn),
                                   lambda b, i, j, k: (b, i, j)),
            scratch_shapes=scratch_shapes,
        ),
        compiler_params=pltpu.CompilerParams(
            dimension_semantics=("parallel", "parallel", "parallel", "arbitrary"),
            vmem_limit_bytes=vmem_limit,
        ),
        cost_estimate=cost,
    )(xb, yb)

    return out.reshape(bshape + (M, N))


if __name__ == "__main__":
    key = jax.random.PRNGKey(0)
    k1, k2, k3, k4 = jax.random.split(key, 4)

    def rel_err(a, b):
        a = a.astype(jnp.float32)
        b = b.astype(jnp.float32)
        return float(jnp.linalg.norm(a - b) / jnp.linalg.norm(b))

    # 1) 2-D matmul, non-tile-aligned dims (no padding / slicing round-trips).
    x2 = jax.random.normal(k1, (96, 160), dtype=jnp.float32)
    y2 = jax.random.normal(k2, (160, 72), dtype=jnp.float32)
    out2 = matmul(x2, y2)
    jax.block_until_ready(out2)
    ref2 = jnp.matmul(x2, y2)
    assert out2.shape == ref2.shape and out2.dtype == ref2.dtype
    assert rel_err(out2, ref2) < 2e-2, f"2D matmul mismatch: {rel_err(out2, ref2)}"

    # 2) Same problem with small explicit tiles -> exercises the partial last-K
    #    block and its in-kernel zero-masking.
    out2b = matmul(x2, y2, tm=64, tn=64, tk=128)
    jax.block_until_ready(out2b)
    assert rel_err(out2b, ref2) < 2e-2, f"K-masked matmul mismatch: {rel_err(out2b, ref2)}"

    # 3) Batched matmul (batch=2, seq=16, hidden=32) — torch.matmul semantics.
    x3 = jax.random.normal(k3, (2, 16, 32), dtype=jnp.float32)
    y3 = jax.random.normal(k4, (2, 32, 24), dtype=jnp.float32)
    out3 = matmul(x3, y3)
    jax.block_until_ready(out3)
    ref3 = jnp.matmul(x3, y3)
    assert out3.shape == ref3.shape and out3.dtype == ref3.dtype
    assert rel_err(out3, ref3) < 2e-2, f"batched matmul mismatch: {rel_err(out3, ref3)}"

    # 4) Broadcast batch: (2,16,32) @ (32,24) — shared RHS is NOT materialized.
    y2d = y3[0]
    out4 = matmul(x3, y2d)
    jax.block_until_ready(out4)
    ref4 = jnp.matmul(x3, y2d)
    assert out4.shape == ref4.shape
    assert rel_err(out4, ref4) < 2e-2, f"broadcast matmul mismatch: {rel_err(out4, ref4)}"

    # 5) bf16 inputs (native-width MXU path, f32 scratch accumulator, bf16 out).
    out5 = matmul(x3.astype(jnp.bfloat16), y3.astype(jnp.bfloat16))
    jax.block_until_ready(out5)
    assert out5.dtype == jnp.bfloat16
    assert rel_err(out5, ref3) < 3e-2, f"bf16 matmul mismatch: {rel_err(out5, ref3)}"

    print("KERNEL_OK")
</pallas_src>

<mosaic_0001>
module attributes {stable_mosaic.version = 11 : i64} {
  func.func @kernel(%arg0: i32, %arg1: i32, %arg2: i32, %arg3: i32, %arg4: memref<1x48x160xf32, #tpu.memory_space<vmem>>, %arg5: memref<1x160x72xf32, #tpu.memory_space<vmem>>, %arg6: memref<1x48x72xf32, #tpu.memory_space<vmem>>) attributes {dimension_semantics = [#tpu.dimension_semantics<parallel>, #tpu.dimension_semantics<parallel>, #tpu.dimension_semantics<parallel>, #tpu.dimension_semantics<arbitrary>], iteration_bounds = array<i64: 1, 2, 1, 1>, scalar_prefetch = 0 : i64, scratch_operands = 0 : i64, tpu.core_type = #tpu.core_type<tc>, window_params = [{transform_indices = @transform_0, window_bounds = array<i64: 1, 48, 160>}, {transform_indices = @transform_1, window_bounds = array<i64: 1, 160, 72>}, {transform_indices = @transform_2, window_bounds = array<i64: 1, 48, 72>}]} {
    %c0 = arith.constant 0 : index
    %c0_0 = arith.constant 0 : index
    %c0_1 = arith.constant 0 : index
    %0 = vector.load %arg4[%c0, %c0_0, %c0_1] : memref<1x48x160xf32, #tpu.memory_space<vmem>>, vector<1x48x160xf32>
    %1 = vector.shape_cast %0 : vector<1x48x160xf32> to vector<48x160xf32>
    %c0_2 = arith.constant 0 : index
    %c0_3 = arith.constant 0 : index
    %c0_4 = arith.constant 0 : index
    %2 = vector.load %arg5[%c0_2, %c0_3, %c0_4] : memref<1x160x72xf32, #tpu.memory_space<vmem>>, vector<1x160x72xf32>
    %3 = vector.shape_cast %2 : vector<1x160x72xf32> to vector<160x72xf32>
    %c0_i32 = arith.constant 0 : i32
    %4 = arith.cmpi eq, %arg3, %c0_i32 : i32
    %5 = arith.extui %4 : i1 to i32
    %c0_i32_5 = arith.constant 0 : i32
    %6 = arith.cmpi ne, %5, %c0_i32_5 : i32
    scf.if %6 {
      %cst_12 = arith.constant 0.000000e+00 : f32
      %14 = vector.broadcast %cst_12 : f32 to vector<48x72xf32>
      %c0_13 = arith.constant 0 : index
      %c0_14 = arith.constant 0 : index
      %c0_15 = arith.constant 0 : index
      %15 = vector.load %arg6[%c0_13, %c0_14, %c0_15] : memref<1x48x72xf32, #tpu.memory_space<vmem>>, vector<1x48x72xf32>
      %16 = vector.shape_cast %15 : vector<1x48x72xf32> to vector<48x72xf32>
      %17 = vector.shape_cast %14 : vector<48x72xf32> to vector<1x48x72xf32>
      tpu.vector_store %arg6[%c0_13, %c0_14, %c0_15], %17 {strides = array<i32>} : memref<1x48x72xf32, #tpu.memory_space<vmem>>, vector<1x48x72xf32>,
    } else {
    }
    %c0_6 = arith.constant 0 : index
    %c0_7 = arith.constant 0 : index
    %c0_8 = arith.constant 0 : index
    %7 = vector.load %arg6[%c0_6, %c0_7, %c0_8] : memref<1x48x72xf32, #tpu.memory_space<vmem>>, vector<1x48x72xf32>
    %8 = vector.shape_cast %7 : vector<1x48x72xf32> to vector<48x72xf32>
    %cst = arith.constant dense<0.000000e+00> : vector<48x72xf32>
    %9 = tpu.matmul %1, %3, %cst {dimension_numbers = #tpu.dot_dimension_numbers<[1], [0], [0], [1], [0, 0, 1, 1], [], []>} : vector<48x160xf32>, vector<160x72xf32>, vector<48x72xf32> -> vector<48x72xf32>
    %10 = arith.addf %8, %9 : vector<48x72xf32>
    %c0_9 = arith.constant 0 : index
    %c0_10 = arith.constant 0 : index
    %c0_11 = arith.constant 0 : index
    %11 = vector.load %arg6[%c0_9, %c0_10, %c0_11] : memref<1x48x72xf32, #tpu.memory_space<vmem>>, vector<1x48x72xf32>
    %12 = vector.shape_cast %11 : vector<1x48x72xf32> to vector<48x72xf32>
    %13 = vector.shape_cast %10 : vector<48x72xf32> to vector<1x48x72xf32>
    tpu.vector_store %arg6[%c0_9, %c0_10, %c0_11], %13 {strides = array<i32>} : memref<1x48x72xf32, #tpu.memory_space<vmem>>, vector<1x48x72xf32>,
    return
  }
  func.func @transform_0(%arg0: i32, %arg1: i32, %arg2: i32, %arg3: i32) -> (i32, i32, i32) {
    %c0_i32 = arith.constant 0 : i32
    return %arg0, %arg1, %arg3 : i32, i32, i32
  }
  func.func @transform_1(%arg0: i32, %arg1: i32, %arg2: i32, %arg3: i32) -> (i32, i32, i32) {
    %c0_i32 = arith.constant 0 : i32
    return %arg0, %arg3, %arg2 : i32, i32, i32
  }
  func.func @transform_2(%arg0: i32, %arg1: i32, %arg2: i32, %arg3: i32) -> (i32, i32, i32) {
    %c0_i32 = arith.constant 0 : i32
    return %arg0, %arg1, %arg2 : i32, i32, i32
  }
}

</mosaic_0001>

<llo_original>
// kernel: tpu_custom_call.1
$region0: #{tpu_custom_call.1}
  #allocation0 [shape = 'u32[]', space=smem, size = 0x4, offset = 0x4, fixed_abs, tag = 'smem constant byte address 0x4 - core index']
  #allocation1 [shape = 'u32[144,128]{1,0:T(1,128)}', space=vmem, size = 0x12000, scoped, tag = 'internal scratch']
  %s0 = inlined_call_operand.vmem [shape: f32[1,96,160], index: 0, kind: input, shape index: {}]
  %s1 = inlined_call_operand.vmem [shape: f32[1,160,72], index: 1, kind: input, shape index: {}]
  %s2 = inlined_call_operand.vmem [shape: f32[1,96,72], index: 2, kind: output, shape index: {}]
  %s3 = sld [smem:[#allocation0]]
  $region45: #{tpu_custom_call.1} parent=0
    _
  %s5 = ssub.s32 1, %s3
  %s6 = scalar_select 0, %s5, %s3
  loop: start=0, step=1, limit=4
  $region2: #{tpu_custom_call.1} parent=0 // loop_pre_header
    _
  $region3: #{tpu_custom_call.1} parent=0 // loop_header
    %s8 = sphi 0, %s12
    %p9 = scmp.ge.s32.totalorder %s8, 4
    %s15 = sphi 0, %s41
    %s16 = sphi 0, %s37
    %s17 = sphi 0, %s33
    %s18 = sphi 0, %s29
    %s19 = sphi 0, %s15
    %s20 = sphi 0, %s16
    %s21 = sphi 0, %s17
    %s22 = sphi 0, %s18
    %s23 = sphi 0, %s19
    %s24 = sphi 0, %s20
    %s25 = sphi 0, %s21
    %s26 = sphi 0, %s22
    %s48 = sphi 0, %s50
    %s51 = sphi 0, %s48
    %s52 = sphi 0, %s51
    %s68 = sphi 0, %s52
    %s78 = sphi 0, %s80
    %s81 = sphi 0, %s78
    %s82 = sphi 0, %s81
    %s98 = sphi 0, %s82
    %s108 = sphi 0, %s110
    %s111 = sphi 0, %s108
    %s112 = sphi 0, %s111
    %s128 = sphi 0, %s112
  $region4: #{tpu_custom_call.1} parent=0 // loop_header_branch
    %11 = sbr.rel (%p9) target = $region8
  $region5: #{tpu_custom_call.1} parent=0 // loop_body
    %s13 = ssub.s32 %s8, 1
    %s14 = ssub.s32 %s8, 2
    %s27 = sadd.s32 1, %s18
    %p28 = scmp.ge.s32.totalorder %s27, 1
    %s29 = scalar_select %p28, 0, %s27
    %s30 = sadd.s32 1, %s17
    %s31 = scalar_select %p28, %s30, %s17
    %p32 = scmp.ge.s32.totalorder %s31, 1
    %s33 = scalar_select %p32, 0, %s31
    %s34 = sadd.s32 1, %s16
    %s35 = scalar_select %p32, %s34, %s16
    %p36 = scmp.ge.s32.totalorder %s35, 2
    %s37 = scalar_select %p36, 0, %s35
    %s38 = sadd.s32 1, %s15
    %s39 = scalar_select %p36, %s38, %s15
    %p40 = scmp.ge.s32.totalorder %s39, 1
    %s41 = scalar_select %p40, 0, %s39
    %s42 = ssub.s32 %s15, %s41
    %s43 = ssub.s32 %s16, %s37
    %s44 = sor.u32 %s42, %s43
    %s45 = ssub.s32 %s18, %s29
    %s46 = sor.u32 %s44, %s45
    %p47 = scmp.eq.s32.totalorder %s46, 0
    %s49 = sadd.s32 %s48, 1
    %s50 = scalar_select %p47, %s48, %s49
    %p53 = pneg %p47
    %p54 = scmp.eq.s32.totalorder %s8, 1
    %p55 = por %p53, %p54
    %p56 = scmp.ne.s32.totalorder %s48, %s51
    %p57 = scmp.eq.s32.totalorder %s8, 0
    %p58 = por %p56, %p57
    %p59 = scmp.ne.s32.totalorder %s48, %s51
    %p60 = scmp.eq.s32.totalorder %s13, 1
    %p61 = por %p59, %p60
    %p62 = scmp.ne.s32.totalorder %s51, %s52
    %p63 = scmp.eq.s32.totalorder %s13, 0
    %p64 = por %p62, %p63
    %p65 = scmp.ne.s32.totalorder %s51, %s52
    %p66 = scmp.eq.s32.totalorder %s14, 1
    %p67 = por %p65, %p66
    %p69 = scmp.ne.s32.totalorder %s52, %s68
    %p70 = scmp.eq.s32.totalorder %s14, 0
    %p71 = por %p69, %p70
    %s72 = ssub.s32 %s15, %s41
    %s73 = ssub.s32 %s18, %s29
    %s74 = sor.u32 %s72, %s73
    %s75 = ssub.s32 %s17, %s33
    %s76 = sor.u32 %s74, %s75
    %p77 = scmp.eq.s32.totalorder %s76, 0
    %s79 = sadd.s32 %s78, 1
    %s80 = scalar_select %p77, %s78, %s79
    %p83 = pneg %p77
    %p84 = scmp.eq.s32.totalorder %s8, 1
    %p85 = por %p83, %p84
    %p86 = scmp.ne.s32.totalorder %s78, %s81
    %p87 = scmp.eq.s32.totalorder %s8, 0
    %p88 = por %p86, %p87
    %p89 = scmp.ne.s32.totalorder %s78, %s81
    %p90 = scmp.eq.s32.totalorder %s13, 1
    %p91 = por %p89, %p90
    %p92 = scmp.ne.s32.totalorder %s81, %s82
    %p93 = scmp.eq.s32.totalorder %s13, 0
    %p94 = por %p92, %p93
    %p95 = scmp.ne.s32.totalorder %s81, %s82
    %p96 = scmp.eq.s32.totalorder %s14, 1
    %p97 = por %p95, %p96
    %p99 = scmp.ne.s32.totalorder %s82, %s98
    %p100 = scmp.eq.s32.totalorder %s14, 0
    %p101 = por %p99, %p100
    %s102 = ssub.s32 %s15, %s41
    %s103 = ssub.s32 %s16, %s37
    %s104 = sor.u32 %s102, %s103
    %s105 = ssub.s32 %s17, %s33
    %s106 = sor.u32 %s104, %s105
    %p107 = scmp.eq.s32.totalorder %s106, 0
    %s109 = sadd.s32 %s108, 1
    %s110 = scalar_select %p107, %s108, %s109
    %p113 = pneg %p107
    %p114 = scmp.eq.s32.totalorder %s8, 1
    %p115 = por %p113, %p114
    %p116 = scmp.ne.s32.totalorder %s108, %s111
    %p117 = scmp.eq.s32.totalorder %s8, 0
    %p118 = por %p116, %p117
    %p119 = scmp.ne.s32.totalorder %s108, %s111
    %p120 = scmp.eq.s32.totalorder %s13, 1
    %p121 = por %p119, %p120
    %p122 = scmp.ne.s32.totalorder %s111, %s112
    %p123 = scmp.eq.s32.totalorder %s13, 0
    %p124 = por %p122, %p123
    %p125 = scmp.ne.s32.totalorder %s111, %s112
    %p126 = scmp.eq.s32.totalorder %s14, 1
    %p127 = por %p125, %p126
    %p129 = scmp.ne.s32.totalorder %s112, %s128
    %p130 = scmp.eq.s32.totalorder %s14, 0
    %p131 = por %p129, %p130
    %p132 = scmp.le.s32.totalorder 1, %s8
    %p133 = scmp.lt.s32.totalorder %s8, 3
    %p134 = pnand %p132, %p133
    %p135 = pneg %p134
    // Predicated region
    $region9: #{tpu_custom_call.1} parent=5 // pred_check
      _
    $region10: #{tpu_custom_call.1} parent=5 // pred_check_branch
      %137 = sbr.rel (%p134) target = $region12
    $region11: #{tpu_custom_call.1} parent=5 // pred_region
      %s138 = ssub.s32 %s8, 1
      // Predicated region
      $region13: #{tpu_custom_call.1} parent=11 // pred_check
        %p139 = pneg %p94
      $region14: #{tpu_custom_call.1} parent=11 // pred_check_branch
        %141 = sbr.rel (%p139) target = $region16
      $region15: #{tpu_custom_call.1} parent=11 // pred_region
        %s142 = smul.u32 20, %s22
        %p143 = scmp.lt.s32.totalorder %s19, 0
        %s144 = scalar_select %p143, %s19, 0
        %p145 = scmp.lt.s32.totalorder %s142, 19
        %s146 = scalar_select %p145, %s142, 19
        %p147 = scmp.lt.s32.totalorder %s21, 0
        %s148 = scalar_select %p147, %s21, 0
        %s149 = sadd.s32 %s148, %s146
        %s150 = smul.addr %s144, 20
        %s151 = sadd.s32 %s149, %s150
        %s152 = smul.addr %s151, 8
        %s153 = scalar_lea.vmem %s1, %s152
        %s154 = smul.u32 20, %s22
      $region16: #{tpu_custom_call.1} parent=11 // pred_fallthru
        _
    $region12: #{tpu_custom_call.1} parent=5 // pred_fallthru
      _
    %p155 = scmp.lt.s32.totalorder %s8, 2
    // Predicated region
    $region17: #{tpu_custom_call.1} parent=5 // pred_check
      %p156 = pneg %p155
    $region18: #{tpu_custom_call.1} parent=5 // pred_check_branch
      %158 = sbr.rel (%p156) target = $region20
    $region19: #{tpu_custom_call.1} parent=5 // pred_region
      // Predicated region
      $region21: #{tpu_custom_call.1} parent=19 // pred_check
        %p159 = pneg %p58
      $region22: #{tpu_custom_call.1} parent=19 // pred_check_branch
        %161 = sbr.rel (%p159) target = $region24
      $region23: #{tpu_custom_call.1} parent=19 // pred_region
        %s162 = smul.u32 6, %s16
        %s163 = smul.u32 2, %s18
        %p164 = scmp.lt.s32.totalorder %s15, 0
        %s165 = scalar_select %p164, %s15, 0
        %p166 = scmp.lt.s32.totalorder %s162, 11
        %s167 = scalar_select %p166, %s162, 11
        %p168 = scmp.lt.s32.totalorder %s163, 1
        %s169 = scalar_select %p168, %s163, 1
        %s170 = smul.addr %s167, 2
        %s171 = sadd.s32 %s169, %s170
        %s172 = smul.addr %s165, 24
        %s173 = sadd.s32 %s171, %s172
        %s174 = smul.addr %s173, 8
        %s175 = scalar_lea.vmem %s0, %s174
        %s176 = smul.u32 6, %s16
        %s177 = smul.u32 2, %s18
      $region24: #{tpu_custom_call.1} parent=19 // pred_fallthru
        _
    $region20: #{tpu_custom_call.1} parent=5 // pred_fallthru
      _
    %p178 = scmp.le.s32.totalorder 1, %s8
    %p179 = scmp.lt.s32.totalorder %s8, 3
    %p180 = pnand %p178, %p179
    %p181 = pneg %p180
    // Predicated region
    $region25: #{tpu_custom_call.1} parent=5 // pred_check
      _
    $region26: #{tpu_custom_call.1} parent=5 // pred_check_branch
      %183 = sbr.rel (%p180) target = $region28
    $region27: #{tpu_custom_call.1} parent=5 // pred_region
      %s184 = ssub.s32 %s8, 1
      %s185 = smul.u32 6, %s20
      %s186 = smul.u32 2, %s22
      %p187 = scmp.lt.s32.totalorder %s19, 0
      %s188 = scalar_select %p187, %s19, 0
      %p189 = scmp.lt.s32.totalorder %s185, 11
      %s190 = scalar_select %p189, %s185, 11
      %p191 = scmp.lt.s32.totalorder %s186, 1
      %s192 = scalar_select %p191, %s186, 1
      %s193 = smul.addr %s190, 2
      %s194 = sadd.s32 %s192, %s193
      %s195 = smul.addr %s188, 24
      %s196 = sadd.s32 %s194, %s195
      %s197 = smul.addr %s196, 8
      %s198 = scalar_lea.vmem %s0, %s197
      %p199 = pneg %p64
      %p200 = pneg %p61
      %s201 = smul.u32 20, %s22
      %p202 = scmp.lt.s32.totalorder %s19, 0
      %s203 = scalar_select %p202, %s19, 0
      %p204 = scmp.lt.s32.totalorder %s201, 19
      %s205 = scalar_select %p204, %s201, 19
      %p206 = scmp.lt.s32.totalorder %s21, 0
      %s207 = scalar_select %p206, %s21, 0
      %s208 = sadd.s32 %s207, %s205
      %s209 = smul.addr %s203, 20
      %s210 = sadd.s32 %s208, %s209
      %s211 = smul.addr %s210, 8
      %s212 = scalar_lea.vmem %s1, %s211
      %p213 = pneg %p94
      %p214 = pneg %p91
      %p215 = pneg %p124
      %p216 = pneg %p121
      %s217 = smul.u32 6, %s20
      %p218 = scmp.lt.s32.totalorder %s19, 0
      %s219 = scalar_select %p218, %s19, 0
      %p220 = scmp.lt.s32.totalorder %s217, 11
      %s221 = scalar_select %p220, %s217, 11
      %p222 = scmp.lt.s32.totalorder %s21, 0
      %s223 = scalar_select %p222, %s21, 0
      %s224 = sadd.s32 %s223, %s221
      %s225 = smul.addr %s219, 12
      %s226 = sadd.s32 %s224, %s225
      %s227 = smul.addr %s226, 8
      %s228 = scalar_lea.vmem %s2, %s227
      %s229 = smul.u32 6, %s20
      %s230 = smul.u32 2, %s22
      %p231 = scmp.lt.s32.totalorder %s19, 0
      %s232 = scalar_select %p231, %s19, 0
      %p233 = scmp.lt.s32.totalorder %s229, 11
      %s234 = scalar_select %p233, %s229, 11
      %p235 = scmp.lt.s32.totalorder %s230, 1
      %s236 = scalar_select %p235, %s230, 1
      %s237 = smul.addr %s234, 2
      %s238 = sadd.s32 %s236, %s237
      %s239 = smul.addr %s232, 24
      %s240 = sadd.s32 %s238, %s239
      %s241 = smul.addr %s240, 8
      %s242 = scalar_lea.vmem %s0, %s241
      %s243 = smul.u32 6, %s20
      %s244 = smul.u32 2, %s22
      %s245 = smul.u32 20, %s22
      %p246 = scmp.lt.s32.totalorder %s19, 0
      %s247 = scalar_select %p246, %s19, 0
      %p248 = scmp.lt.s32.totalorder %s245, 19
      %s249 = scalar_select %p248, %s245, 19
      %p250 = scmp.lt.s32.totalorder %s21, 0
      %s251 = scalar_select %p250, %s21, 0
      %s252 = sadd.s32 %s251, %s249
      %s253 = smul.addr %s247, 20
      %s254 = sadd.s32 %s252, %s253
      %s255 = smul.addr %s254, 8
      %s256 = scalar_lea.vmem %s1, %s255
      %s257 = smul.u32 20, %s22
      %s258 = smul.u32 6, %s20
      %p259 = scmp.lt.s32.totalorder %s19, 0
      %s260 = scalar_select %p259, %s19, 0
      %p261 = scmp.lt.s32.totalorder %s258, 11
      %s262 = scalar_select %p261, %s258, 11
      %p263 = scmp.lt.s32.totalorder %s21, 0
      %s264 = scalar_select %p263, %s21, 0
      %s265 = sadd.s32 %s264, %s262
      %s266 = smul.addr %s260, 12
      %s267 = sadd.s32 %s265, %s266
      %s268 = smul.addr %s267, 8
      %s269 = scalar_lea.vmem %s2, %s268
      %s270 = smul.u32 6, %s20
      %v271 = vld [vmem:[%s242] sm:$0xff]
      %v272 = vld [vmem:[%s242 + $0x8] sm:$0xff]
      %v273 = vld [vmem:[%s242 + $0x10] sm:$0xff]
      %v274 = vld [vmem:[%s242 + $0x18] sm:$0xff]
      %v275 = vld [vmem:[%s242 + $0x20] sm:$0xff]
      %v276 = vld [vmem:[%s242 + $0x28] sm:$0xff]
      %v277 = vld [vmem:[%s242 + $0x30] sm:$0xff]
      %v278 = vld [vmem:[%s242 + $0x38] sm:$0xff]
      %v279 = vld [vmem:[%s242 + $0x40] sm:$0xff]
      %v280 = vld [vmem:[%s242 + $0x48] sm:$0xff]
      %v281 = vld [vmem:[%s242 + $0x50] sm:$0xff]
      %v282 = vld [vmem:[%s242 + $0x58] sm:$0xff]
      %v283 = vld [vmem:[%s256] sm:$0xff]
      %v284 = vld [vmem:[%s256 + $0x8] sm:$0xff]
      %v285 = vld [vmem:[%s256 + $0x10] sm:$0xff]
      %v286 = vld [vmem:[%s256 + $0x18] sm:$0xff]
      %v287 = vld [vmem:[%s256 + $0x20] sm:$0xff]
      %v288 = vld [vmem:[%s256 + $0x28] sm:$0xff]
      %v289 = vld [vmem:[%s256 + $0x30] sm:$0xff]
      %v290 = vld [vmem:[%s256 + $0x38] sm:$0xff]
      %v291 = vld [vmem:[%s256 + $0x40] sm:$0xff]
      %v292 = vld [vmem:[%s256 + $0x48] sm:$0xff]
      %v293 = vld [vmem:[%s256 + $0x50] sm:$0xff]
      %v294 = vld [vmem:[%s256 + $0x58] sm:$0xff]
      %v295 = vld [vmem:[%s256 + $0x60] sm:$0xff]
      %v296 = vld [vmem:[%s256 + $0x68] sm:$0xff]
      %v297 = vld [vmem:[%s256 + $0x70] sm:$0xff]
      %v298 = vld [vmem:[%s256 + $0x78] sm:$0xff]
      %v299 = vld [vmem:[%s256 + $0x80] sm:$0xff]
      %v300 = vld [vmem:[%s256 + $0x88] sm:$0xff]
      %v301 = vld [vmem:[%s256 + $0x90] sm:$0xff]
      %v302 = vld [vmem:[%s256 + $0x98] sm:$0xff]
      %p303 = scmp.eq.s32.totalorder %s22, 0
      // Predicated region
      $region29: #{tpu_custom_call.1} parent=27 // pred_check
        %p304 = pneg %p303
      $region30: #{tpu_custom_call.1} parent=27 // pred_check_branch
        %306 = sbr.rel (%p304) target = $region32
      $region31: #{tpu_custom_call.1} parent=27 // pred_region
        %vm307 = vcmask 588800
        %308 = vst.msk [vmem:[%s269] sm:$0xff] %vm307, 0.0
        %309 = vst.msk [vmem:[%s269 + $0x8] sm:$0xff] %vm307, 0.0
        %310 = vst.msk [vmem:[%s269 + $0x10] sm:$0xff] %vm307, 0.0
        %311 = vst.msk [vmem:[%s269 + $0x18] sm:$0xff] %vm307, 0.0
        %312 = vst.msk [vmem:[%s269 + $0x20] sm:$0xff] %vm307, 0.0
        %313 = vst.msk [vmem:[%s269 + $0x28] sm:$0xff] %vm307, 0.0
      $region32: #{tpu_custom_call.1} parent=27 // pred_fallthru
        _
      %v314 = vld [vmem:[%s269] sm:$0xff]
      %v315 = vld [vmem:[%s269 + $0x8] sm:$0xff]
      %v316 = vld [vmem:[%s269 + $0x10] sm:$0xff]
      %v317 = vld [vmem:[%s269 + $0x18] sm:$0xff]
      %v318 = vld [vmem:[%s269 + $0x20] sm:$0xff]
      %v319 = vld [vmem:[%s269 + $0x28] sm:$0xff]
      %vm320 = vcmask 261120
      %v322 = vsel %vm320, %v272, 0
      %v325 = vsel %vm320, %v274, 0
      %v328 = vsel %vm320, %v276, 0
      %v331 = vsel %vm320, %v278, 0
      %v334 = vsel %vm320, %v280, 0
      %v337 = vsel %vm320, %v282, 0
      %339 = vmatprep.subr.mxu0 0.0
      %340 = vmatpush1.msra.mxu0 %v283
      %341 = vmatprep.subr.mxu0 0.0
      %342 = vmatpush1.msra.mxu0 %v284
      %343 = vmatprep.subr.mxu0 0.0
      %344 = vmatpush1.msra.mxu0 %v285
      %345 = vmatprep.subr.mxu0 0.0
      %346 = vmatpush1.msra.mxu0 %v286
      %347 = vmatprep.subr.mxu0 0.0
      %348 = vmatpush1.msra.mxu0 %v287
      %349 = vmatprep.subr.mxu0 0.0
      %350 = vmatpush1.msra.mxu0 %v288
      %351 = vmatprep.subr.mxu0 0.0
      %352 = vmatpush1.msra.mxu0 %v289
      %353 = vmatprep.subr.mxu0 0.0
      %354 = vmatpush1.msra.mxu0 %v290
      %355 = vmatprep.subr.mxu0 0.0
      %356 = vmatpush1.msra.mxu0 %v291
      %357 = vmatprep.subr.mxu0 0.0
      %358 = vmatpush1.msra.mxu0 %v292
      %359 = vmatprep.subr.mxu0 0.0
      %360 = vmatpush1.msra.mxu0 %v293
      %361 = vmatprep.subr.mxu0 0.0
      %362 = vmatpush1.msra.mxu0 %v294
      %363 = vmatprep.subr.mxu0 0.0
      %364 = vmatpush1.msra.mxu0 %v295
      %365 = vmatprep.subr.mxu0 0.0
      %366 = vmatpush1.msra.mxu0 %v296
      %367 = vmatprep.subr.mxu0 0.0
      %368 = vmatpush1.msra.mxu0 %v297
      %369 = vmatprep.subr.mxu0 0.0
      %370 = vmatpush1.msra.mxu0 %v298
      %371 = vmatprep.subr.mxu0 0.0
      %372 = vmatpush1.msra.mxu0 %v299
      %373 = vmatprep.subr.mxu0 0.0
      %374 = vmatpush1.msra.mxu0 %v300
      %375 = vmatprep.subr.mxu0 0.0
      %376 = vmatpush1.msra.mxu0 %v301
      %377 = vmatprep.subr.mxu0 0.0
      %378 = vmatpush1.msra.mxu0 %v302
      %379 = vmatprep.subr.mxu0 0.0
      %380 = vmatpush1.msra.mxu0 0.0
      %381 = vmatprep.subr.mxu0 0.0
      %382 = vmatpush1.msra.mxu0 0.0
      %383 = vmatprep.subr.mxu0 0.0
      %384 = vmatpush1.msra.mxu0 0.0
      %385 = vmatprep.subr.mxu0 0.0
      %386 = vmatpush1.msra.mxu0 0.0
      %387 = vmatprep.subr.mxu0 0.0
      %388 = vmatpush1.msra.mxu0 0.0
      %389 = vmatprep.subr.mxu0 0.0
      %390 = vmatpush1.msra.mxu0 0.0
      %391 = vmatprep.subr.mxu0 0.0
      %392 = vmatpush1.msra.mxu0 0.0
      %393 = vmatprep.subr.mxu0 0.0
      %394 = vmatpush1.msra.mxu0 0.0
      %395 = vmatprep.subr.mxu0 0.0
      %396 = vmatpush1.msra.mxu0 0.0
      %397 = vmatprep.subr.mxu0 0.0
      %398 = vmatpush1.msra.mxu0 0.0
      %399 = vmatprep.subr.mxu0 0.0
      %400 = vmatpush1.msra.mxu0 0.0
      %401 = vmatprep.subr.mxu0 0.0
      %402 = vmatpush1.msra.mxu0 0.0
      %403 = vmatprep.mubr.f32.mxu0 %v322
      %404 = vmatmul.mubr.f32.gmra.mrb[0].mxu0 %v271
      %v405 = vpop.f32.mrb[0].mxu0
      %v406 = vadd.f32 0.0, %v405
      %v407 = vpop.f32.mrb[0].mxu0
      %408 = vmatprep.mubr.f32.mxu0 %v325
      %409 = vmatmul.mubr.f32.gmra.mrb[0].mxu0 %v273
      %v410 = vpop.f32.mrb[0].mxu0
      %v411 = vadd.f32 0.0, %v410
      %v412 = vpop.f32.mrb[0].mxu0
      %413 = vmatprep.mubr.f32.mxu0 %v328
      %414 = vmatmul.mubr.f32.gmra.mrb[0].mxu0 %v275
      %v415 = vpop.f32.mrb[0].mxu0
      %v416 = vadd.f32 0.0, %v415
      %v417 = vpop.f32.mrb[0].mxu0
      %418 = vmatprep.mubr.f32.mxu0 %v331
      %419 = vmatmul.mubr.f32.gmra.mrb[0].mxu0 %v277
      %v420 = vpop.f32.mrb[0].mxu0
      %v421 = vadd.f32 0.0, %v420
      %v422 = vpop.f32.mrb[0].mxu0
      %423 = vmatprep.mubr.f32.mxu0 %v334
      %424 = vmatmul.mubr.f32.gmra.mrb[0].mxu0 %v279
      %v425 = vpop.f32.mrb[0].mxu0
      %v426 = vadd.f32 0.0, %v425
      %v427 = vpop.f32.mrb[0].mxu0
      %428 = vmatprep.mubr.f32.mxu0 %v337
      %429 = vmatmul.mubr.f32.gmra.mrb[0].mxu0 %v281
      %v430 = vpop.f32.mrb[0].mxu0
      %v431 = vadd.f32 0.0, %v430
      %v432 = vpop.f32.mrb[0].mxu0
      %433 = vdwg.mxu0
      %v434 = vadd.f32 %v314, %v406
      %v435 = vadd.f32 %v315, %v411
      %v436 = vadd.f32 %v316, %v416
      %v437 = vadd.f32 %v317, %v421
      %v438 = vadd.f32 %v318, %v426
      %v439 = vadd.f32 %v319, %v431
      %vm440 = vcmask 588800
      %441 = vst.msk [vmem:[%s269] sm:$0xff] %vm440, %v434
      %442 = vst.msk [vmem:[%s269 + $0x8] sm:$0xff] %vm440, %v435
      %443 = vst.msk [vmem:[%s269 + $0x10] sm:$0xff] %vm440, %v436
      %444 = vst.msk [vmem:[%s269 + $0x18] sm:$0xff] %vm440, %v437
      %445 = vst.msk [vmem:[%s269 + $0x20] sm:$0xff] %vm440, %v438
      %446 = vst.msk [vmem:[%s269 + $0x28] sm:$0xff] %vm440, %v439
      %s447 = smul.u32 6, %s20
      %p448 = scmp.lt.s32.totalorder %s19, 0
      %s449 = scalar_select %p448, %s19, 0
      %p450 = scmp.lt.s32.totalorder %s447, 11
      %s451 = scalar_select %p450, %s447, 11
      %p452 = scmp.lt.s32.totalorder %s21, 0
      %s453 = scalar_select %p452, %s21, 0
      %s454 = sadd.s32 %s453, %s451
      %s455 = smul.addr %s449, 12
      %s456 = sadd.s32 %s454, %s455
      %s457 = smul.addr %s456, 8
      %s458 = scalar_lea.vmem %s2, %s457
      // Predicated region
      $region33: #{tpu_custom_call.1} parent=27 // pred_check
        %p459 = pneg %p121
      $region34: #{tpu_custom_call.1} parent=27 // pred_check_branch
        %461 = sbr.rel (%p459) target = $region36
      $region35: #{tpu_custom_call.1} parent=27 // pred_region
        %s462 = smul.u32 6, %s20
      $region36: #{tpu_custom_call.1} parent=27 // pred_fallthru
        _
    $region28: #{tpu_custom_call.1} parent=5 // pred_fallthru
      _
    %p463 = scmp.le.s32.totalorder 2, %s8
    // Predicated region
    $region37: #{tpu_custom_call.1} parent=5 // pred_check
      %p464 = pneg %p463
    $region38: #{tpu_custom_call.1} parent=5 // pred_check_branch
      %466 = sbr.rel (%p464) target = $region40
    $region39: #{tpu_custom_call.1} parent=5 // pred_region
      %s467 = ssub.s32 %s8, 2
      // Predicated region
      $region41: #{tpu_custom_call.1} parent=39 // pred_check
        %p468 = pneg %p127
      $region42: #{tpu_custom_call.1} parent=39 // pred_check_branch
        %470 = sbr.rel (%p468) target = $region44
      $region43: #{tpu_custom_call.1} parent=39 // pred_region
        %s471 = smul.u32 6, %s24
        %p472 = scmp.lt.s32.totalorder %s23, 0
        %s473 = scalar_select %p472, %s23, 0
        %p474 = scmp.lt.s32.totalorder %s471, 11
        %s475 = scalar_select %p474, %s471, 11
        %p476 = scmp.lt.s32.totalorder %s25, 0
        %s477 = scalar_select %p476, %s25, 0
        %s478 = sadd.s32 %s477, %s475
        %s479 = smul.addr %s473, 12
        %s480 = sadd.s32 %s478, %s479
        %s481 = smul.addr %s480, 8
        %s482 = scalar_lea.vmem %s2, %s481
      $region44: #{tpu_custom_call.1} parent=39 // pred_fallthru
        _
    $region40: #{tpu_custom_call.1} parent=5 // pred_fallthru
      _
  $region6: #{tpu_custom_call.1} parent=0 // loop_footer
    %s12 = sadd.s32 1, %s8
  $region7: #{tpu_custom_call.1} parent=0 // loop_footer_branch
    %7 = sbr.rel target = $region3
  $region8: #{tpu_custom_call.1} parent=0 // loop_exit
    _

</llo_original>
